<compile_context>
chip_gen: v7x
topology: tpu7x:2x2x1
jax: 0.10.0
libtpu: 0.0.40
codegen_flags: <defaults>
</compile_context>

<pallas_src>
from functools import partial

import jax
import jax.numpy as jnp
from jax.experimental import pallas as pl
from jax.experimental.pallas import tpu as pltpu

EPS = 1e-5


# --------------------------------------------------------------------------
# planning helpers
# --------------------------------------------------------------------------
def _round_up(v, m):
    return (v + m - 1) // m * m


def _cdiv(a, b):
    return -(-a // b)


def _vmem_limit():
    try:
        cap = int(pltpu.get_tpu_info().vmem_capacity_bytes)
    except Exception:
        cap = 64 * 1024 * 1024          # conservative (v7x per-TC) fallback
    return int(cap * 0.7)               # scoped limit with headroom


def _pick_c_tile(C, sub, cap=256):
    """Largest divisor of C that is a multiple of `sub`, <= cap, and leaves
    >= 2 channel tiles when possible (keeps the parallel grid axis >= 2 for
    megacore / v7x).  Falls back to the full C (dim-exemption) otherwise."""
    if C % sub != 0 or C < 2 * sub:
        return C
    best = sub
    d = sub
    while d * 2 <= C:
        if C % d == 0 and d <= cap:
            best = d
        d += sub
    return best


def _pick_fused_c_tile(N, C, HW, sub, itemsize, budget):
    """Largest channel tile whose (N, c_tile, HW) slab (double-buffered in/out
    plus f32 temporaries) fits the VMEM budget; prefers >= 2 tiles."""
    cands = [C]
    if C % sub == 0:
        d = sub
        while d < C:
            if C % d == 0:
                cands.append(d)
            d += sub
    per_chan = N * HW * (4 * itemsize + 12)
    fits = [c for c in cands if c * per_chan <= budget]
    if not fits:
        return None
    split = [c for c in fits if 2 * c <= C]
    return max(split) if split else max(fits)


def _plan_hw(HW, c_tile, live_bytes_per_elem, budget, max_cap):
    """Spatial tile plan -> (hw_tile, n_s, needs_mask)."""
    per_col = max(1, c_tile * live_bytes_per_elem)
    max_hw = (budget // per_col) // 128 * 128
    max_hw = max(128, min(max_hw, max_cap))
    if HW <= max_hw:
        return HW, 1, False                      # full-dim tile, no remainder
    n_s = _cdiv(HW, max_hw)
    hw_tile = _round_up(_cdiv(HW, n_s), 128)
    n_s = _cdiv(HW, hw_tile)
    return hw_tile, n_s, (n_s * hw_tile != HW)


# --------------------------------------------------------------------------
# kernels
# --------------------------------------------------------------------------
def _stats_kernel(x_ref, sum_ref, sq_ref, *, hw, hw_tile, lane_w, needs_mask):
    """Accumulate per-channel (sum, sum-of-squares) lane-partials over (N, HW)."""
    n = pl.program_id(1)
    s = pl.program_id(2)

    @pl.when((n == 0) & (s == 0))
    def _():
        sum_ref[...] = jnp.zeros_like(sum_ref)
        sq_ref[...] = jnp.zeros_like(sq_ref)

    x = x_ref[0].astype(jnp.float32)                       # (c_tile, hw_tile)
    if needs_mask:
        # Last spatial block overruns HW: zero the out-of-range lanes so the
        # sums only see valid data (padding values of the block are undefined).
        col = jax.lax.broadcasted_iota(jnp.int32, x.shape, 1) + s * hw_tile
        x = jnp.where(col < hw, x, 0.0)

    if lane_w == 128:
        # Lane-wide partials: pure VPU adds over 128-lane column groups; the
        # cross-lane reduce is done once on tiny (C, 128) arrays in the wrapper.
        blk = x[:, 0:128]
        acc_s = blk
        acc_q = blk * blk
        for g in range(1, hw_tile // 128):
            blk = x[:, g * 128:(g + 1) * 128]
            acc_s = acc_s + blk
            acc_q = acc_q + blk * blk
        sum_ref[...] += acc_s
        sq_ref[...] += acc_q
    else:
        # hw_tile not a multiple of 128 (small full-dim tile): plain reduce.
        sum_ref[...] += jnp.sum(x, axis=1, keepdims=True)
        sq_ref[...] += jnp.sum(x * x, axis=1, keepdims=True)


def _apply_kernel(x_ref, scale_ref, shift_ref, o_ref, *, bf16_math):
    """out = x * scale[n, c] + shift[n, c]  (scale/shift broadcast over lanes)."""
    if bf16_math:
        # Packed-bf16 VPU math for bf16 I/O (v6e/v7x); scale/shift casts are tiny.
        sc = scale_ref[...].astype(jnp.bfloat16)
        sh = shift_ref[...].astype(jnp.bfloat16)
        o_ref[...] = (x_ref[...] * sc + sh).astype(o_ref.dtype)
    else:
        x = x_ref[...].astype(jnp.float32)
        o_ref[...] = (x * scale_ref[...] + shift_ref[...]).astype(o_ref.dtype)


def _fused_kernel(x_ref, gain_ref, bias_ref, o_ref, *, count, eps, bf16_math):
    """Single pass: batch stats over (N, HW) + class-conditional affine."""
    x = x_ref[...].astype(jnp.float32)                     # (N, c_tile, HW)
    s1 = jnp.sum(x, axis=2, keepdims=True)                 # lane reduce (N,c,1)
    s2 = jnp.sum(x * x, axis=2, keepdims=True)
    tot1 = s1[0]                                           # (c_tile, 1)
    tot2 = s2[0]
    for i in range(1, x.shape[0]):                         # static N unroll
        tot1 = tot1 + s1[i]
        tot2 = tot2 + s2[i]
    mean = tot1 / count
    # TODO(synk): E[x^2]-mean^2 cancels badly if |mean| >> std; use a shifted
    # accumulation if such un-normalized activations are expected.
    var = jnp.maximum(tot2 / count - mean * mean, 0.0)
    inv_std = jax.lax.rsqrt(var + eps)                     # (c_tile, 1)
    scale = gain_ref[...] * inv_std                        # (N, c_tile, 1)
    shift = bias_ref[...] - mean * scale
    if bf16_math:
        o_ref[...] = (x_ref[...] * scale.astype(jnp.bfloat16)
                      + shift.astype(jnp.bfloat16)).astype(o_ref.dtype)
    else:
        o_ref[...] = (x * scale + shift).astype(o_ref.dtype)


# --------------------------------------------------------------------------
# wrapper
# --------------------------------------------------------------------------
def ccbn_forward(x_nchw, y, wg, bg, wb, bb, eps=EPS, *, fused=None,
                 max_hw_tile=None):
    """x_nchw: (N, C, H, W); y: (N, D); wg/wb: (D, C); bg/bb: (C,).

    Output dtype follows x (bf16 x -> bf16 out with packed-bf16 apply math).
    `fused=False` forces the two-pass path; `max_hw_tile` caps the spatial
    tile (testing knob)."""
    N, C, H, W = x_nchw.shape
    HW = H * W
    io_dtype = jnp.dtype(x_nchw.dtype)
    itemsize = io_dtype.itemsize
    bf16_math = io_dtype == jnp.bfloat16
    sub = max(8, 32 // itemsize)                 # sublane quantum: 8 f32 / 16 bf16

    vmem_limit = _vmem_limit()
    budget = (vmem_limit * 3) // 4               # VMEM budget for pipelined tiles
    hw_cap = max_hw_tile if max_hw_tile is not None else 16384

    x = x_nchw.reshape(N, C, HW)                 # contiguous reshape: layout no-op

    # Tiny (N, C) conditioning math stays inside the same jit (XLA fuses it).
    yf = y.astype(jnp.float32)
    gain = 1.0 + (yf @ wg.astype(jnp.float32) + bg.astype(jnp.float32))   # (N, C)
    bias = yf @ wb.astype(jnp.float32) + bb.astype(jnp.float32)           # (N, C)

    # ---------- fused single-pass path (slab fits VMEM) ----------
    c_tile_f = None
    if fused is not False:
        c_tile_f = _pick_fused_c_tile(N, C, HW, sub, itemsize, budget)
    if c_tile_f is not None:
        n_c = C // c_tile_f
        out = pl.pallas_call(
            partial(_fused_kernel, count=float(N * HW), eps=float(eps),
                    bf16_math=bf16_math),
            grid=(n_c,),
            in_specs=[
                pl.BlockSpec((N, c_tile_f, HW), lambda c: (0, c, 0)),
                pl.BlockSpec((N, c_tile_f, 1), lambda c: (0, c, 0)),
                pl.BlockSpec((N, c_tile_f, 1), lambda c: (0, c, 0)),
            ],
            out_specs=pl.BlockSpec((N, c_tile_f, HW), lambda c: (0, c, 0)),
            out_shape=jax.ShapeDtypeStruct((N, C, HW), io_dtype),
            compiler_params=pltpu.CompilerParams(
                dimension_semantics=("parallel",),
                vmem_limit_bytes=vmem_limit),
        )(x, gain.reshape(N, C, 1), bias.reshape(N, C, 1))
        return out.reshape(N, C, H, W)

    # ---------- two-pass path ----------
    c_tile = _pick_c_tile(C, sub)
    n_c = C // c_tile

    # pass 1: per-channel sum / sumsq (only the input is pipelined -> 2 copies)
    hw1, n_s1, mask1 = _plan_hw(HW, c_tile, 2 * itemsize + 12, budget, hw_cap)
    lane_w = 128 if hw1 % 128 == 0 else 1
    csum, csq = pl.pallas_call(
        partial(_stats_kernel, hw=HW, hw_tile=hw1, lane_w=lane_w,
                needs_mask=mask1),
        grid=(n_c, N, n_s1),
        in_specs=[pl.BlockSpec((1, c_tile, hw1), lambda c, n, s: (n, c, s))],
        out_specs=(
            pl.BlockSpec((c_tile, lane_w), lambda c, n, s: (c, 0)),
            pl.BlockSpec((c_tile, lane_w), lambda c, n, s: (c, 0)),
        ),
        out_shape=(
            jax.ShapeDtypeStruct((C, lane_w), jnp.float32),
            jax.ShapeDtypeStruct((C, lane_w), jnp.float32),
        ),
        compiler_params=pltpu.CompilerParams(
            dimension_semantics=("parallel", "arbitrary", "arbitrary"),
            vmem_limit_bytes=vmem_limit),
    )(x)

    # tiny wrapper math (fused by XLA inside the same jit)
    count = float(N * HW)
    mean = jnp.sum(csum, axis=-1) / count                          # (C,)
    # TODO(synk): E[x^2]-mean^2 cancels if |mean| >> std; consider a shifted /
    # Welford-style accumulation for un-normalized activation statistics.
    var = jnp.maximum(jnp.sum(csq, axis=-1) / count - mean * mean, 0.0)
    inv_std = jax.lax.rsqrt(var + eps)                             # (C,)
    scale = gain * inv_std[None, :]                                # (N, C)
    shift = bias - mean[None, :] * scale

    # pass 2: affine normalize (in + out pipelined -> 4 live copies)
    hw2, n_s2, _ = _plan_hw(HW, c_tile, 4 * itemsize + 4, budget, hw_cap)
    out = pl.pallas_call(
        partial(_apply_kernel, bf16_math=bf16_math),
        grid=(N, n_c, n_s2),
        in_specs=[
            pl.BlockSpec((1, c_tile, hw2), lambda n, c, s: (n, c, s)),
            pl.BlockSpec((1, c_tile, 1), lambda n, c, s: (n, c, 0)),
            pl.BlockSpec((1, c_tile, 1), lambda n, c, s: (n, c, 0)),
        ],
        out_specs=pl.BlockSpec((1, c_tile, hw2), lambda n, c, s: (n, c, s)),
        out_shape=jax.ShapeDtypeStruct((N, C, HW), io_dtype),
        compiler_params=pltpu.CompilerParams(
            dimension_semantics=("parallel", "parallel", "parallel"),
            vmem_limit_bytes=vmem_limit),
    )(x, scale.reshape(N, C, 1), shift.reshape(N, C, 1))
    return out.reshape(N, C, H, W)


def ccbn_reference(x_nchw, y, wg, bg, wb, bb, eps=EPS):
    """Pure-JAX reference matching F.batch_norm(training=True) + CC affine."""
    x = x_nchw.astype(jnp.float32)
    gain = 1.0 + (y @ wg + bg)
    bias = y @ wb + bb
    mean = jnp.mean(x, axis=(0, 2, 3), keepdims=True)
    var = jnp.mean((x - mean) ** 2, axis=(0, 2, 3), keepdims=True)
    xn = (x - mean) * jax.lax.rsqrt(var + eps)
    return xn * gain[:, :, None, None] + bias[:, :, None, None]


# --------------------------------------------------------------------------
# self-test
# --------------------------------------------------------------------------
if __name__ == "__main__":
    N, C, H, W = 2, 4, 16, 16
    D = 8  # conditioning-vector width (input_size)

    key = jax.random.PRNGKey(0)
    kx, ky, kwg, kbg, kwb, kbb = jax.random.split(key, 6)
    x = jax.random.normal(kx, (N, C, H, W), dtype=jnp.float32)
    y = jax.random.normal(ky, (N, D), dtype=jnp.float32)
    # nn.Linear(D, C) weights stored transposed as (D, C) for y @ W.
    wg = 0.1 * jax.random.normal(kwg, (D, C), dtype=jnp.float32)
    bg = 0.1 * jax.random.normal(kbg, (C,), dtype=jnp.float32)
    wb = 0.1 * jax.random.normal(kwb, (D, C), dtype=jnp.float32)
    bb = 0.1 * jax.random.normal(kbb, (C,), dtype=jnp.float32)

    ccbn = jax.jit(ccbn_forward, static_argnames=("fused", "max_hw_tile"))

    def check(out, ref, atol, rtol, tag):
        o = out.astype(jnp.float32)
        ok = bool(jnp.allclose(o, ref, atol=atol, rtol=rtol))
        err = float(jnp.max(jnp.abs(o - ref)))
        assert ok, f"{tag}: max abs err {err}"

    # 1) fused single-pass path, f32
    out = jax.block_until_ready(ccbn(x, y, wg, bg, wb, bb))
    assert out.shape == (N, C, H, W)
    check(out, ccbn_reference(x, y, wg, bg, wb, bb), 2e-3, 2e-3, "fused f32")

    # 2) forced two-pass path, f32 (stats + apply kernels)
    out2 = jax.block_until_ready(ccbn(x, y, wg, bg, wb, bb, fused=False))
    check(out2, ccbn_reference(x, y, wg, bg, wb, bb), 2e-3, 2e-3, "two-pass f32")

    # 3) two-pass with spatial-remainder masking + multiple channel tiles
    C3, H3 = 16, 18                               # HW=324: not a multiple of 128
    k3 = jax.random.split(kx, 4)
    x3 = jax.random.normal(k3[0], (N, C3, H3, H3), dtype=jnp.float32)
    wg3 = 0.1 * jax.random.normal(k3[1], (D, C3), dtype=jnp.float32)
    wb3 = 0.1 * jax.random.normal(k3[2], (D, C3), dtype=jnp.float32)
    bg3 = 0.1 * jax.random.normal(k3[3], (C3,), dtype=jnp.float32)
    bb3 = jnp.zeros((C3,), jnp.float32)
    out3 = jax.block_until_ready(
        ccbn(x3, y, wg3, bg3, wb3, bb3, fused=False, max_hw_tile=128))
    check(out3, ccbn_reference(x3, y, wg3, bg3, wb3, bb3), 2e-3, 2e-3,
          "masked two-pass f32")

    # 4) bf16 I/O: fused and two-pass (packed-bf16 apply math)
    C4, H4 = 32, 32
    k4 = jax.random.split(ky, 4)
    x4 = jax.random.normal(k4[0], (N, C4, H4, H4), dtype=jnp.float32)
    wg4 = 0.1 * jax.random.normal(k4[1], (D, C4), dtype=jnp.float32)
    wb4 = 0.1 * jax.random.normal(k4[2], (D, C4), dtype=jnp.float32)
    bg4 = 0.1 * jax.random.normal(k4[3], (C4,), dtype=jnp.float32)
    bb4 = jnp.zeros((C4,), jnp.float32)
    x4b = x4.astype(jnp.bfloat16)
    ref4 = ccbn_reference(x4b.astype(jnp.float32), y, wg4, bg4, wb4, bb4)
    out4a = jax.block_until_ready(ccbn(x4b, y, wg4, bg4, wb4, bb4))
    check(out4a, ref4, 3e-2, 3e-2, "fused bf16")
    out4b = jax.block_until_ready(ccbn(x4b, y, wg4, bg4, wb4, bb4, fused=False))
    check(out4b, ref4, 3e-2, 3e-2, "two-pass bf16")

    print("KERNEL_OK")
</pallas_src>

<mosaic_0001>
module attributes {stable_mosaic.version = 11 : i64} {
  func.func @_fused_kernel(%arg0: i32, %arg1: memref<2x4x256xf32, #tpu.memory_space<vmem>>, %arg2: memref<2x4x1xf32, #tpu.memory_space<vmem>>, %arg3: memref<2x4x1xf32, #tpu.memory_space<vmem>>, %arg4: memref<2x4x256xf32, #tpu.memory_space<vmem>>) attributes {dimension_semantics = [#tpu.dimension_semantics<parallel>], iteration_bounds = array<i64: 1>, scalar_prefetch = 0 : i64, scratch_operands = 0 : i64, tpu.core_type = #tpu.core_type<tc>, window_params = [{transform_indices = @transform_0, window_bounds = array<i64: 2, 4, 256>}, {transform_indices = @transform_1, window_bounds = array<i64: 2, 4, 1>}, {transform_indices = @transform_2, window_bounds = array<i64: 2, 4, 1>}, {transform_indices = @transform_3, window_bounds = array<i64: 2, 4, 256>}]} {
    %c0 = arith.constant 0 : index
    %c0_0 = arith.constant 0 : index
    %c0_1 = arith.constant 0 : index
    %0 = vector.load %arg1[%c0, %c0_0, %c0_1] : memref<2x4x256xf32, #tpu.memory_space<vmem>>, vector<2x4x256xf32>
    %cst = arith.constant dense<0.000000e+00> : vector<2x4xf32>
    %1 = vector.multi_reduction <add>, %0, %cst [2] : vector<2x4x256xf32> to vector<2x4xf32>
    %2 = vector.shape_cast %1 : vector<2x4xf32> to vector<2x4x1xf32>
    %3 = arith.mulf %0, %0 : vector<2x4x256xf32>
    %cst_2 = arith.constant dense<0.000000e+00> : vector<2x4xf32>
    %4 = vector.multi_reduction <add>, %3, %cst_2 [2] : vector<2x4x256xf32> to vector<2x4xf32>
    %5 = vector.shape_cast %4 : vector<2x4xf32> to vector<2x4x1xf32>
    %6 = vector.extract_strided_slice %2 {offsets = [0, 0, 0], sizes = [1, 4, 1], strides = [1, 1, 1]} : vector<2x4x1xf32> to vector<1x4x1xf32>
    %7 = vector.shape_cast %6 : vector<1x4x1xf32> to vector<4x1xf32>
    %8 = vector.extract_strided_slice %5 {offsets = [0, 0, 0], sizes = [1, 4, 1], strides = [1, 1, 1]} : vector<2x4x1xf32> to vector<1x4x1xf32>
    %9 = vector.shape_cast %8 : vector<1x4x1xf32> to vector<4x1xf32>
    %10 = vector.extract_strided_slice %2 {offsets = [1, 0, 0], sizes = [1, 4, 1], strides = [1, 1, 1]} : vector<2x4x1xf32> to vector<1x4x1xf32>
    %11 = vector.shape_cast %10 : vector<1x4x1xf32> to vector<4x1xf32>
    %12 = arith.addf %7, %11 : vector<4x1xf32>
    %13 = vector.extract_strided_slice %5 {offsets = [1, 0, 0], sizes = [1, 4, 1], strides = [1, 1, 1]} : vector<2x4x1xf32> to vector<1x4x1xf32>
    %14 = vector.shape_cast %13 : vector<1x4x1xf32> to vector<4x1xf32>
    %15 = arith.addf %9, %14 : vector<4x1xf32>
    %cst_3 = arith.constant 5.120000e+02 : f32
    %16 = vector.broadcast %cst_3 : f32 to vector<4x1xf32>
    %17 = arith.divf %12, %16 : vector<4x1xf32>
    %cst_4 = arith.constant 5.120000e+02 : f32
    %18 = vector.broadcast %cst_4 : f32 to vector<4x1xf32>
    %19 = arith.divf %15, %18 : vector<4x1xf32>
    %20 = arith.mulf %17, %17 : vector<4x1xf32>
    %21 = arith.subf %19, %20 : vector<4x1xf32>
    %cst_5 = arith.constant 0.000000e+00 : f32
    %22 = vector.broadcast %cst_5 : f32 to vector<4x1xf32>
    %23 = arith.maximumf %21, %22 : vector<4x1xf32>
    %cst_6 = arith.constant 9.99999974E-6 : f32
    %24 = vector.broadcast %cst_6 : f32 to vector<4x1xf32>
    %25 = arith.addf %23, %24 : vector<4x1xf32>
    %26 = math.rsqrt %25 : vector<4x1xf32>
    %c0_7 = arith.constant 0 : index
    %c0_8 = arith.constant 0 : index
    %c0_9 = arith.constant 0 : index
    %27 = vector.load %arg2[%c0_7, %c0_8, %c0_9] : memref<2x4x1xf32, #tpu.memory_space<vmem>>, vector<2x4x1xf32>
    %28 = vector.shape_cast %26 : vector<4x1xf32> to vector<1x4x1xf32>
    %29 = vector.broadcast %28 : vector<1x4x1xf32> to vector<2x4x1xf32>
    %30 = arith.mulf %27, %29 : vector<2x4x1xf32>
    %c0_10 = arith.constant 0 : index
    %c0_11 = arith.constant 0 : index
    %c0_12 = arith.constant 0 : index
    %31 = vector.load %arg3[%c0_10, %c0_11, %c0_12] : memref<2x4x1xf32, #tpu.memory_space<vmem>>, vector<2x4x1xf32>
    %32 = vector.shape_cast %17 : vector<4x1xf32> to vector<1x4x1xf32>
    %33 = vector.broadcast %32 : vector<1x4x1xf32> to vector<2x4x1xf32>
    %34 = arith.mulf %33, %30 : vector<2x4x1xf32>
    %35 = arith.subf %31, %34 : vector<2x4x1xf32>
    %36 = vector.broadcast %30 : vector<2x4x1xf32> to vector<2x4x256xf32>
    %37 = arith.mulf %0, %36 : vector<2x4x256xf32>
    %38 = vector.broadcast %35 : vector<2x4x1xf32> to vector<2x4x256xf32>
    %39 = arith.addf %37, %38 : vector<2x4x256xf32>
    %c0_13 = arith.constant 0 : index
    %c0_14 = arith.constant 0 : index
    %c0_15 = arith.constant 0 : index
    %40 = vector.load %arg4[%c0_13, %c0_14, %c0_15] : memref<2x4x256xf32, #tpu.memory_space<vmem>>, vector<2x4x256xf32>
    tpu.vector_store %arg4[%c0_13, %c0_14, %c0_15], %39 {strides = array<i32>} : memref<2x4x256xf32, #tpu.memory_space<vmem>>, vector<2x4x256xf32>,
    return
  }
  func.func @transform_0(%arg0: i32) -> (i32, i32, i32) {
    %c0_i32 = arith.constant 0 : i32
    %c0_i32_0 = arith.constant 0 : i32
    %c0_i32_1 = arith.constant 0 : i32
    return %c0_i32, %arg0, %c0_i32_0 : i32, i32, i32
  }
  func.func @transform_1(%arg0: i32) -> (i32, i32, i32) {
    %c0_i32 = arith.constant 0 : i32
    %c0_i32_0 = arith.constant 0 : i32
    %c0_i32_1 = arith.constant 0 : i32
    return %c0_i32, %arg0, %c0_i32_0 : i32, i32, i32
  }
  func.func @transform_2(%arg0: i32) -> (i32, i32, i32) {
    %c0_i32 = arith.constant 0 : i32
    %c0_i32_0 = arith.constant 0 : i32
    %c0_i32_1 = arith.constant 0 : i32
    return %c0_i32, %arg0, %c0_i32_0 : i32, i32, i32
  }
  func.func @transform_3(%arg0: i32) -> (i32, i32, i32) {
    %c0_i32 = arith.constant 0 : i32
    %c0_i32_0 = arith.constant 0 : i32
    %c0_i32_1 = arith.constant 0 : i32
    return %c0_i32, %arg0, %c0_i32_0 : i32, i32, i32
  }
}

</mosaic_0001>

<llo_original>
// kernel: ccbn_forward.1
$region0: #{ccbn_forward.1}
  #allocation0 [shape = 'u32[]', space=smem, size = 0x4, offset = 0x4, fixed_abs, tag = 'smem constant byte address 0x4 - core index']
  #allocation1 [shape = 'u32[144,128]{1,0:T(1,128)}', space=vmem, size = 0x12000, scoped, tag = 'internal scratch']
  %s0 = inlined_call_operand.vmem [shape: f32[2,4,256], index: 0, kind: input, shape index: {}]
  %s1 = inlined_call_operand.vmem [shape: f32[2,4,1], index: 1, kind: input, shape index: {}]
  %s2 = inlined_call_operand.vmem [shape: f32[2,4,1], index: 2, kind: input, shape index: {}]
  %s3 = inlined_call_operand.vmem [shape: f32[2,4,256], index: 3, kind: output, shape index: {}]
  %s4 = sld [smem:[#allocation0]]
  $region22: #{ccbn_forward.1} parent=0
    _
  %s6 = ssub.s32 1, %s4
  %s7 = scalar_select 0, %s6, %s4
  // Predicated region
  $region2: #{ccbn_forward.1} parent=0 // pred_check
    _
  $region3: #{ccbn_forward.1} parent=0 // pred_check_branch
    %9 = sbr.rel (0) target = $region5
  $region4: #{ccbn_forward.1} parent=0 // pred_region
    _
  $region5: #{ccbn_forward.1} parent=0 // pred_fallthru
    _
  // Predicated region
  $region6: #{ccbn_forward.1} parent=0 // pred_check
    _
  $region7: #{ccbn_forward.1} parent=0 // pred_check_branch
    %11 = sbr.rel (0) target = $region9
  $region8: #{ccbn_forward.1} parent=0 // pred_region
    _
  $region9: #{ccbn_forward.1} parent=0 // pred_fallthru
    _
  // Predicated region
  $region10: #{ccbn_forward.1} parent=0 // pred_check
    _
  $region11: #{ccbn_forward.1} parent=0 // pred_check_branch
    %13 = sbr.rel (0) target = $region13
  $region12: #{ccbn_forward.1} parent=0 // pred_region
    _
  $region13: #{ccbn_forward.1} parent=0 // pred_fallthru
    _
  %v14 = vld [vmem:[%s0] sm:$0xff]
  %v15 = vld [vmem:[%s0 + $0x8] sm:$0xff]
  %v18 = vcombine.high %v14, %v14
  %v19 = vcombine.high %v15, %v15
  %vm22 = vcmask 1043456
  %v23 = vsel %vm22, %v14, 0.0
  %v24 = vsel %vm22, %v18, 0.0
  %v25 = vadd.f32 %v23, %v24
  %26 = vadd.xlane.f32.xlu0 %v25
  %v27 = vpop.xlane.xlu0 %26
  %v28 = vsel %vm22, %v15, 0.0
  %v29 = vsel %vm22, %v19, 0.0
  %v30 = vadd.f32 %v28, %v29
  %31 = vadd.xlane.f32.xlu0 %v30
  %v32 = vpop.xlane.xlu0 %31
  %v33 = vmul.f32 %v14, %v14
  %v34 = vmul.f32 %v15, %v15
  %v37 = vcombine.high %v33, %v33
  %v38 = vcombine.high %v34, %v34
  %v41 = vsel %vm22, %v33, 0.0
  %v42 = vsel %vm22, %v37, 0.0
  %v43 = vadd.f32 %v41, %v42
  %44 = vadd.xlane.f32.xlu0 %v43
  %v45 = vpop.xlane.xlu0 %44
  %v46 = vsel %vm22, %v34, 0.0
  %v47 = vsel %vm22, %v38, 0.0
  %v48 = vadd.f32 %v46, %v47
  %49 = vadd.xlane.f32.xlu0 %v48
  %v50 = vpop.xlane.xlu0 %49
  %v51 = vadd.f32 %v27, %v32
  %v52 = vadd.f32 %v45, %v50
  %v53 = vrcp.pop 512.0
  %v54 = vmul.f32 %v51, %v53
  %v55 = vmul.f32 %v52, %v53
  %v56 = vmul.f32 %v54, %v54
  %v57 = vsub.f32 %v55, %v56
  %v58 = vmax.f32 %v57, 0.0
  %v59 = vadd.f32 %v58, 1e-05
  %v60 = vrsqrt.pop %v59
  %v61 = vld [vmem:[%s1] sm:$0xf]
  %v62 = vld [vmem:[%s1 + $0x4] sm:$0xf]
  %v63 = vmul.f32 %v61, %v60
  %v64 = vmul.f32 %v62, %v60
  %v65 = vld [vmem:[%s2] sm:$0xf]
  %v66 = vld [vmem:[%s2 + $0x4] sm:$0xf]
  %v67 = vmul.f32 %v54, %v63
  %v68 = vmul.f32 %v54, %v64
  %v69 = vsub.f32 %v65, %v67
  %v70 = vsub.f32 %v66, %v68
  %72 = vset.pattern.permute.xlu0 0
  %73 = vperm.xlu0 %72, %v63
  %v74 = vpop.permute.xlu0 %73
  %76 = vset.pattern.permute.xlu0 0
  %77 = vperm.xlu0 %76, %v64
  %v78 = vpop.permute.xlu0 %77
  %v80 = vunpack.c.l.s4 839922192
  %v81 = vunpack.c.0.s8 %v80
  %v82 = vlaneseq
  %v83 = vshrl.u32 %v82, 7
  %v84 = vsub.s32 %v81, %v83
  %v85 = vrot.slane %v74, %v84
  %v87 = vunpack.c.l.s4 839922192
  %v88 = vunpack.c.0.s8 %v87
  %v89 = vlaneseq
  %v90 = vshrl.u32 %v89, 7
  %v91 = vsub.s32 %v88, %v90
  %v92 = vrot.slane %v78, %v91
  %v95 = vmul.f32 %v14, %v85
  %v96 = vmul.f32 %v15, %v92
  %98 = vset.pattern.permute.xlu0 0
  %99 = vperm.xlu0 %98, %v69
  %v100 = vpop.permute.xlu0 %99
  %102 = vset.pattern.permute.xlu0 0
  %103 = vperm.xlu0 %102, %v70
  %v104 = vpop.permute.xlu0 %103
  %v106 = vunpack.c.l.s4 839922192
  %v107 = vunpack.c.0.s8 %v106
  %v108 = vlaneseq
  %v109 = vshrl.u32 %v108, 7
  %v110 = vsub.s32 %v107, %v109
  %v111 = vrot.slane %v100, %v110
  %v113 = vunpack.c.l.s4 839922192
  %v114 = vunpack.c.0.s8 %v113
  %v115 = vlaneseq
  %v116 = vshrl.u32 %v115, 7
  %v117 = vsub.s32 %v114, %v116
  %v118 = vrot.slane %v104, %v117
  %v121 = vadd.f32 %v95, %v111
  %v122 = vadd.f32 %v96, %v118
  %123 = vst [vmem:[%s3] sm:$0xff] %v121
  %124 = vst [vmem:[%s3 + $0x8] sm:$0xff] %v122
  // Predicated region
  $region14: #{ccbn_forward.1} parent=0 // pred_check
    _
  $region15: #{ccbn_forward.1} parent=0 // pred_check_branch
    %126 = sbr.rel (0) target = $region17
  $region16: #{ccbn_forward.1} parent=0 // pred_region
    _
  $region17: #{ccbn_forward.1} parent=0 // pred_fallthru
    _
  // Predicated region
  $region18: #{ccbn_forward.1} parent=0 // pred_check
    _
  $region19: #{ccbn_forward.1} parent=0 // pred_check_branch
    %128 = sbr.rel (0) target = $region21
  $region20: #{ccbn_forward.1} parent=0 // pred_region
    _
  $region21: #{ccbn_forward.1} parent=0 // pred_fallthru
    _

</llo_original>
